<compile_context>
chip_gen: v7x
topology: tpu7x:2x2x1
jax: 0.10.0
libtpu: 0.0.40
codegen_flags: <defaults>
</compile_context>

<pallas_src>
import jax
import jax.numpy as jnp
from jax.experimental import pallas as pl
from jax.experimental.pallas import tpu as pltpu


def _round_up(x, m):
    return (x + m - 1) // m * m


# --------------------------------------------------------------------------
# Kernel: one MXU matmul (bf16 operands, f32 accumulate) + bias add.
# --------------------------------------------------------------------------
def dueling_head_kernel(x_ref, w_ref, b_ref, q_ref):
    # x: (TB, D)  w: (D, TNP)  b: (1, TNP) f32  q: (TB, TNP)
    q_ref[...] = (
        jnp.dot(x_ref[...], w_ref[...], preferred_element_type=jnp.float32)
        + b_ref[...]
    ).astype(q_ref.dtype)


# --------------------------------------------------------------------------
# Per-generation planning helpers.
# --------------------------------------------------------------------------
def _vmem_budget_bytes():
    # Leave headroom for compiler scratch / semaphores: ~51 MiB on v7x
    # (64 MiB physical), ~102 MiB on v5e/v6e (128 MiB physical).
    try:
        cap = int(pltpu.get_tpu_info().vmem_capacity_bytes)
    except Exception:  # conservative fallback if HW query is unavailable
        cap = 64 << 20
    return int(min(cap - (12 << 20), int(cap * 0.8)))


def _plan_col_tiling(D, NA, w_bytes):
    """Pick the output-column tile TNP (multiple of 128) and padded width NP."""
    budget = _vmem_budget_bytes()
    NP128 = _round_up(max(NA, 1), 128)
    # Weight tile is accounted at 2x (default double-buffering of BlockSpecs);
    # keep it under ~half the budget so x / q tiles have room.
    w_budget = budget // 2
    TNP = NP128
    while TNP > 128 and 2 * D * TNP * w_bytes > w_budget:
        TNP = _round_up(max(TNP // 2, 128), 128)
    NP = _round_up(NP128, TNP)
    return NP, TNP, budget


def _plan_batch_tile(B, D, TNP, budget, x_bytes, o_bytes, sub):
    rem = budget - 2 * D * TNP * x_bytes - 2 * TNP * 4 - (2 << 20)
    per_row = 2 * D * x_bytes + 2 * TNP * o_bytes  # double-buffered x + q rows
    fit_tb = max(sub, (max(rem, per_row * sub) // per_row) // sub * sub)
    # Aim for >= ~4 grid steps over the batch so x/q DMAs pipeline with the
    # MXU and the "parallel" batch axis can shard across v7x's two TCs.
    Bp = _round_up(B, sub)
    want_tb = max(sub, _round_up(pl.cdiv(Bp, 4), sub))
    return int(min(512, fit_tb, want_tb))


# --------------------------------------------------------------------------
# Parameter fusion (call once per parameter update, not per forward).
# --------------------------------------------------------------------------
def fuse_dueling_params(w_value, b_value, w_adv, b_adv, n_assets, action_atoms,
                        *, compute_dtype=jnp.bfloat16):
    """Fold q = V + A - mean_a A into a single (D, NP) weight / (1, NP) bias.

    W_fused[:, n*A+a] = wv[:, n] + wa[:, n*A+a] - mean_a' wa[:, n*A+a']
    (exact by linearity). Padded to a lane-dense multiple of the column tile.
    """
    D = w_value.shape[0]
    N, A = n_assets, action_atoms
    NA = N * A
    w_bytes = jnp.dtype(compute_dtype).itemsize
    NP, _, _ = _plan_col_tiling(D, NA, w_bytes)

    wv = w_value.astype(jnp.float32)
    wa = w_adv.astype(jnp.float32).reshape(D, N, A)
    w_fused = (wv[:, :, None] + wa - wa.mean(-1, keepdims=True)).reshape(D, NA)

    bv = b_value.astype(jnp.float32)
    ba = b_adv.astype(jnp.float32).reshape(N, A)
    b_fused = (bv[:, None] + ba - ba.mean(-1, keepdims=True)).reshape(NA)

    if NP != NA:
        w_fused = jnp.pad(w_fused, ((0, 0), (0, NP - NA)))
        b_fused = jnp.pad(b_fused, (0, NP - NA))

    return w_fused.astype(compute_dtype), b_fused.reshape(1, NP).astype(jnp.float32)


# --------------------------------------------------------------------------
# Fused forward (Pallas).
# --------------------------------------------------------------------------
def dueling_head_fused(state_emb, w_fused, b_fused, n_assets, action_atoms,
                       *, batch_tile=None, out_dtype=jnp.float32):
    """state_emb: (B, d_model); w_fused/b_fused from fuse_dueling_params.
       Returns qvals (B, n_assets, action_atoms)."""
    B, D = state_emb.shape
    N, A = n_assets, action_atoms
    NA = N * A
    NP = w_fused.shape[1]
    compute_dtype = w_fused.dtype
    x_bytes = jnp.dtype(compute_dtype).itemsize
    o_bytes = jnp.dtype(out_dtype).itemsize

    NP_plan, TNP, budget = _plan_col_tiling(D, NA, x_bytes)
    assert NP == NP_plan, "w_fused was fused with a different tiling plan"

    sub = 16 if x_bytes < 4 else 8  # sublane alignment for packed dtypes
    if batch_tile is None:
        batch_tile = _plan_batch_tile(B, D, TNP, budget, x_bytes, o_bytes, sub)
    TB = _round_up(max(batch_tile, sub), sub)
    BP = _round_up(B, TB)

    x = state_emb.astype(compute_dtype)
    if BP != B:
        x = jnp.pad(x, ((0, BP - B), (0, 0)))

    n_i, n_j = BP // TB, NP // TNP

    # Declared VMEM counts the constant-index weight/bias blocks at their real
    # 2-deep buffering, plus double-buffered x / q tiles and a small margin.
    vmem_bytes = (2 * TB * D * x_bytes + 2 * D * TNP * x_bytes
                  + 2 * TNP * 4 + 2 * TB * TNP * o_bytes + (2 << 20))
    vmem_bytes = int(min(max(vmem_bytes, 16 << 20), budget))

    q2d = pl.pallas_call(
        dueling_head_kernel,
        out_shape=jax.ShapeDtypeStruct((BP, NP), out_dtype),
        grid_spec=pl.GridSpec(
            # Column tiles outermost -> each weight tile is DMA'd exactly once
            # and stays resident while batch tiles stream through (innermost).
            grid=(n_j, n_i),
            in_specs=[
                pl.BlockSpec((TB, D), lambda j, i: (i, 0)),    # x: batch-tiled
                pl.BlockSpec((D, TNP), lambda j, i: (0, j)),   # fused weight
                pl.BlockSpec((1, TNP), lambda j, i: (0, j)),   # fused bias
            ],
            out_specs=pl.BlockSpec((TB, TNP), lambda j, i: (i, j)),
        ),
        compiler_params=pltpu.CompilerParams(
            dimension_semantics=("parallel", "parallel"),
            vmem_limit_bytes=vmem_bytes,
        ),
    )(x, w_fused, b_fused)

    # Strip padding, reshape to (B, N, A) in the wrapper (layout plumbing only).
    return q2d[:B, :NA].reshape(B, N, A)


# --------------------------------------------------------------------------
# Convenience entry point with a problem-size gate.
# --------------------------------------------------------------------------
def dueling_head(state_emb, w_value, b_value, w_adv, b_adv,
                 n_assets, action_atoms, *, compute_dtype=jnp.bfloat16,
                 out_dtype=jnp.float32, batch_tile=None, use_pallas=None):
    B, D = state_emb.shape
    NA = n_assets * action_atoms
    if use_pallas is None:
        # Tiny heads / batches: 128-lane padding + per-call overhead dominate.
        use_pallas = (B * D * max(NA, 128)) >= (1 << 22)
    if not use_pallas:
        return dueling_head_ref(state_emb, w_value, b_value, w_adv, b_adv,
                                n_assets, action_atoms).astype(out_dtype)
    w_fused, b_fused = fuse_dueling_params(
        w_value, b_value, w_adv, b_adv, n_assets, action_atoms,
        compute_dtype=compute_dtype)
    return dueling_head_fused(state_emb, w_fused, b_fused,
                              n_assets, action_atoms,
                              batch_tile=batch_tile, out_dtype=out_dtype)


def dueling_head_ref(state_emb, w_value, b_value, w_adv, b_adv,
                     n_assets, action_atoms):
    value = state_emb @ w_value + b_value                       # (B, N)
    adv = (state_emb @ w_adv + b_adv).reshape(
        state_emb.shape[0], n_assets, action_atoms)             # (B, N, A)
    return value[..., None] + adv - adv.mean(-1, keepdims=True)


if __name__ == "__main__":
    # Small shapes consistent with the module's forward.
    B, d_model = 2, 32
    n_assets, action_atoms = 4, 8

    key = jax.random.PRNGKey(0)
    k_x, k_wv, k_bv, k_wa, k_ba = jax.random.split(key, 5)

    state_emb = jax.random.normal(k_x, (B, d_model), dtype=jnp.float32)

    # Deterministic parameter init (uniform, roughly matching nn.Linear scale).
    bound = 1.0 / (d_model ** 0.5)
    w_value = jax.random.uniform(k_wv, (d_model, n_assets),
                                 minval=-bound, maxval=bound, dtype=jnp.float32)
    b_value = jax.random.uniform(k_bv, (n_assets,),
                                 minval=-bound, maxval=bound, dtype=jnp.float32)
    w_adv = jax.random.uniform(k_wa, (d_model, n_assets * action_atoms),
                               minval=-bound, maxval=bound, dtype=jnp.float32)
    b_adv = jax.random.uniform(k_ba, (n_assets * action_atoms,),
                               minval=-bound, maxval=bound, dtype=jnp.float32)

    # Fuse once (as you would per parameter update), then run the Pallas forward.
    w_fused, b_fused = fuse_dueling_params(w_value, b_value, w_adv, b_adv,
                                           n_assets, action_atoms)
    qvals = dueling_head_fused(state_emb, w_fused, b_fused,
                               n_assets, action_atoms)
    qvals = jax.block_until_ready(qvals)

    ref = dueling_head_ref(state_emb, w_value, b_value, w_adv, b_adv,
                           n_assets, action_atoms)
    assert qvals.shape == (B, n_assets, action_atoms)
    assert qvals.dtype == jnp.float32
    # bf16 operands with f32 accumulation vs the pure-f32 reference.
    assert jnp.allclose(qvals, ref, atol=5e-2, rtol=5e-2), "mismatch vs JAX reference"

    print("KERNEL_OK")
</pallas_src>

<mosaic_0001>
module attributes {stable_mosaic.version = 11 : i64} {
  func.func @dueling_head_kernel(%arg0: i32, %arg1: i32, %arg2: memref<16x32xbf16, #tpu.memory_space<vmem>>, %arg3: memref<32x128xbf16, #tpu.memory_space<vmem>>, %arg4: memref<1x128xf32, #tpu.memory_space<vmem>>, %arg5: memref<16x128xf32, #tpu.memory_space<vmem>>) attributes {dimension_semantics = [#tpu.dimension_semantics<parallel>, #tpu.dimension_semantics<parallel>], iteration_bounds = array<i64: 1, 1>, scalar_prefetch = 0 : i64, scratch_operands = 0 : i64, tpu.core_type = #tpu.core_type<tc>, window_params = [{transform_indices = @transform_0, window_bounds = array<i64: 16, 32>}, {transform_indices = @transform_1, window_bounds = array<i64: 32, 128>}, {transform_indices = @transform_2, window_bounds = array<i64: 1, 128>}, {transform_indices = @transform_3, window_bounds = array<i64: 16, 128>}]} {
    %c0 = arith.constant 0 : index
    %c0_0 = arith.constant 0 : index
    %0 = vector.load %arg2[%c0, %c0_0] : memref<16x32xbf16, #tpu.memory_space<vmem>>, vector<16x32xbf16>
    %c0_1 = arith.constant 0 : index
    %c0_2 = arith.constant 0 : index
    %1 = vector.load %arg3[%c0_1, %c0_2] : memref<32x128xbf16, #tpu.memory_space<vmem>>, vector<32x128xbf16>
    %cst = arith.constant dense<0.000000e+00> : vector<16x128xf32>
    %2 = tpu.matmul %0, %1, %cst {dimension_numbers = #tpu.dot_dimension_numbers<[1], [0], [0], [1], [0, 0, 1, 1], [], []>} : vector<16x32xbf16>, vector<32x128xbf16>, vector<16x128xf32> -> vector<16x128xf32>
    %c0_3 = arith.constant 0 : index
    %c0_4 = arith.constant 0 : index
    %3 = vector.load %arg4[%c0_3, %c0_4] : memref<1x128xf32, #tpu.memory_space<vmem>>, vector<1x128xf32>
    %4 = vector.broadcast %3 : vector<1x128xf32> to vector<16x128xf32>
    %5 = arith.addf %2, %4 : vector<16x128xf32>
    %c0_5 = arith.constant 0 : index
    %c0_6 = arith.constant 0 : index
    %6 = vector.load %arg5[%c0_5, %c0_6] : memref<16x128xf32, #tpu.memory_space<vmem>>, vector<16x128xf32>
    tpu.vector_store %arg5[%c0_5, %c0_6], %5 {strides = array<i32>} : memref<16x128xf32, #tpu.memory_space<vmem>>, vector<16x128xf32>,
    return
  }
  func.func @transform_0(%arg0: i32, %arg1: i32) -> (i32, i32) {
    %c0_i32 = arith.constant 0 : i32
    %c0_i32_0 = arith.constant 0 : i32
    return %arg1, %c0_i32 : i32, i32
  }
  func.func @transform_1(%arg0: i32, %arg1: i32) -> (i32, i32) {
    %c0_i32 = arith.constant 0 : i32
    %c0_i32_0 = arith.constant 0 : i32
    return %c0_i32, %arg0 : i32, i32
  }
  func.func @transform_2(%arg0: i32, %arg1: i32) -> (i32, i32) {
    %c0_i32 = arith.constant 0 : i32
    %c0_i32_0 = arith.constant 0 : i32
    return %c0_i32, %arg0 : i32, i32
  }
  func.func @transform_3(%arg0: i32, %arg1: i32) -> (i32, i32) {
    %c0_i32 = arith.constant 0 : i32
    return %arg1, %arg0 : i32, i32
  }
}

</mosaic_0001>

<llo_original>
// kernel: tpu_custom_call.1
$region0: #{tpu_custom_call.1}
  #allocation0 [shape = 'u32[]', space=smem, size = 0x4, offset = 0x4, fixed_abs, tag = 'smem constant byte address 0x4 - core index']
  #allocation1 [shape = 'u32[144,128]{1,0:T(1,128)}', space=vmem, size = 0x12000, scoped, tag = 'internal scratch']
  %s0 = inlined_call_operand.hbm [shape: bf16[16,32], index: 0, kind: input, shape index: {}]
  %s1 = inlined_call_operand.hbm [shape: bf16[32,128], index: 1, kind: input, shape index: {}]
  %s2 = inlined_call_operand.vmem [shape: f32[1,128], index: 2, kind: input, shape index: {}]
  %s3 = inlined_call_operand.hbm [shape: f32[16,128], index: 3, kind: output, shape index: {}]
  %s4 = sld [smem:[#allocation0]]
  $region30: #{tpu_custom_call.1} parent=0
    _
  %s6 = ssub.s32 1, %s4
  %s7 = scalar_select 0, %s6, %s4
  $region1: #{tpu_custom_call.1} parent=0
    #allocation2 [shape = 'u8[4096]{0}', space=vmem, size = 0x1000, scoped, tag = 'input window, operand 0, single buffered']
    #allocation3 [shape = 's32[1]{0}', space=sflag, size = 0x4, scoped, tag = 'scoped memory for tpu_custom_call.1']
    #allocation4 [shape = 's32[1]{0}', space=sflag, size = 0x4, scoped, tag = 'scoped memory for tpu_custom_call.1']
    #allocation5 [shape = 'u8[8192]{0}', space=vmem, size = 0x2000, scoped, tag = 'input window, operand 1, single buffered']
    #allocation6 [shape = 's32[1]{0}', space=sflag, size = 0x4, scoped, tag = 'scoped memory for tpu_custom_call.1']
    #allocation7 [shape = 'u8[8192]{0}', space=vmem, size = 0x2000, scoped, tag = 'output window, operand 0, single buffered']
    %8 = vsyncpa [#allocation3], 0
    %9 = vsyncpa [#allocation6], 0
    %10 = vsyncpa [#allocation4], 0
    // Predicated region
    $region2: #{tpu_custom_call.1} parent=1 // pred_check
      _
    $region3: #{tpu_custom_call.1} parent=1 // pred_check_branch
      %12 = sbr.rel (0) target = $region5
    $region4: #{tpu_custom_call.1} parent=1 // pred_region
      %s14 = ssub.s32 128, 128
      %15 = vsyncadd [#allocation3], %s14
      %s16 = sshll.u32 [#allocation2], 4
      %s17 = int_to_ptr.vmem [resolvable:$true] %s16
      %22 = dma.hbm_to_vmem [thread:$0]  %s0, 128, %s17, [#allocation3], 64, 64, 4
    $region5: #{tpu_custom_call.1} parent=1 // pred_fallthru
      _
    // Predicated region
    $region6: #{tpu_custom_call.1} parent=1 // pred_check
      _
    $region7: #{tpu_custom_call.1} parent=1 // pred_check_branch
      %24 = sbr.rel (0) target = $region9
    $region8: #{tpu_custom_call.1} parent=1 // pred_region
      %s26 = ssub.s32 256, 256
      %27 = vsyncadd [#allocation6], %s26
      %s28 = sshll.u32 [#allocation5], 4
      %s29 = int_to_ptr.vmem [resolvable:$true] %s28
      %34 = dma.hbm_to_vmem [thread:$0]  %s1, 256, %s29, [#allocation6], 64, 64, 4
    $region9: #{tpu_custom_call.1} parent=1 // pred_fallthru
      _
    // Predicated region
    $region10: #{tpu_custom_call.1} parent=1 // pred_check
      _
    $region11: #{tpu_custom_call.1} parent=1 // pred_check_branch
      %36 = sbr.rel (0) target = $region13
    $region12: #{tpu_custom_call.1} parent=1 // pred_region
      _
    $region13: #{tpu_custom_call.1} parent=1 // pred_fallthru
      _
    // Predicated region
    $region14: #{tpu_custom_call.1} parent=1 // pred_check
      _
    $region15: #{tpu_custom_call.1} parent=1 // pred_check_branch
      %38 = sbr.rel (0) target = $region17
    $region16: #{tpu_custom_call.1} parent=1 // pred_region
      %39 = dma.done [#allocation3], 128
    $region17: #{tpu_custom_call.1} parent=1 // pred_fallthru
      _
    // Predicated region
    $region18: #{tpu_custom_call.1} parent=1 // pred_check
      _
    $region19: #{tpu_custom_call.1} parent=1 // pred_check_branch
      %41 = sbr.rel (0) target = $region21
    $region20: #{tpu_custom_call.1} parent=1 // pred_region
      %42 = dma.done [#allocation6], 256
    $region21: #{tpu_custom_call.1} parent=1 // pred_fallthru
      _
    %v44 = vld [vmem:[#allocation2] sm:$0xf]
    %v45 = vld [vmem:[#allocation2 + $0x4] sm:$0xf]
    %v46 = vld [vmem:[#allocation5] sm:$0xf]
    %v47 = vld [vmem:[#allocation5 + $0x4] sm:$0xf]
    %v48 = vld [vmem:[#allocation5 + $0x8] sm:$0xf]
    %v49 = vld [vmem:[#allocation5 + $0xc] sm:$0xf]
    %v50 = vld [vmem:[%s2] sm:$0x1]
    %v52 = vlaneseq
    %v53 = vshrl.u32 %v52, 7
    %v54 = vsub.s32 0, %v53
    %v55 = vrot.slane %v50, %v54
    %v59 = vunpack.c.l.b16 %v44
    %v60 = vunpack.c.l.b16 %v45
    %v61 = vpack.c.b16 %v60, %v59
    %v66 = vunpack.c.l.b16 %v46
    %v67 = vunpack.c.l.b16 %v47
    %v68 = vunpack.c.l.b16 %v48
    %v69 = vunpack.c.l.b16 %v49
    %v70 = vpack.c.b16 %v67, %v66
    %v71 = vpack.c.b16 %v69, %v68
    %vm74 = vcmask 261120
    %v76 = vsel %vm74, %v61, 0
    %78 = vmatprep.subr.bf16.mxu0 0
    %79 = vmatpush1.bf16.msra.mxu0 %v70
    %80 = vmatprep.subr.bf16.mxu0 0
    %81 = vmatpush1.bf16.msra.mxu0 %v71
    %82 = vmatprep.subr.bf16.mxu0 0
    %83 = vmatpush1.bf16.msra.mxu0 0
    %84 = vmatprep.subr.bf16.mxu0 0
    %85 = vmatpush1.bf16.msra.mxu0 0
    %86 = vmatprep.subr.bf16.mxu0 0
    %87 = vmatpush1.bf16.msra.mxu0 0
    %88 = vmatprep.subr.bf16.mxu0 0
    %89 = vmatpush1.bf16.msra.mxu0 0
    %90 = vmatprep.subr.bf16.mxu0 0
    %91 = vmatpush1.bf16.msra.mxu0 0
    %92 = vmatprep.subr.bf16.mxu0 0
    %93 = vmatpush1.bf16.msra.mxu0 0
    %94 = vmatprep.subr.bf16.mxu0 0
    %95 = vmatpush1.bf16.msra.mxu0 0
    %96 = vmatprep.subr.bf16.mxu0 0
    %97 = vmatpush1.bf16.msra.mxu0 0
    %98 = vmatprep.subr.bf16.mxu0 0
    %99 = vmatpush1.bf16.msra.mxu0 0
    %100 = vmatprep.subr.bf16.mxu0 0
    %101 = vmatpush1.bf16.msra.mxu0 0
    %102 = vmatprep.subr.bf16.mxu0 0
    %103 = vmatpush1.bf16.msra.mxu0 0
    %104 = vmatprep.subr.bf16.mxu0 0
    %105 = vmatpush1.bf16.msra.mxu0 0
    %106 = vmatprep.subr.bf16.mxu0 0
    %107 = vmatpush1.bf16.msra.mxu0 0
    %108 = vmatprep.subr.bf16.mxu0 0
    %109 = vmatpush1.bf16.msra.mxu0 0
    %110 = vmatprep.mubr.bf16.mxu0 0
    %111 = vmatmul.mubr.bf16.gmra.mrb[0].mxu0 %v76
    %v112 = vpop.f32.mrb[0].mxu0
    %v113 = vadd.f32 %v55, %v112
    %v114 = vpop.f32.mrb[0].mxu0
    %v115 = vpop.f32.mrb[0].mxu0
    %v116 = vadd.f32 %v55, %v115
    %v117 = vpop.f32.mrb[0].mxu0
    %118 = vdwg.mxu0
    %119 = vst [vmem:[#allocation7] sm:$0xff] %v113
    %120 = vst [vmem:[#allocation7 + $0x8] sm:$0xff] %v116
    // Predicated region
    $region22: #{tpu_custom_call.1} parent=1 // pred_check
      _
    $region23: #{tpu_custom_call.1} parent=1 // pred_check_branch
      %122 = sbr.rel (0) target = $region25
    $region24: #{tpu_custom_call.1} parent=1 // pred_region
      %s124 = ssub.s32 256, 256
      %125 = vsyncadd [#allocation4], %s124
      %s126 = sshll.u32 [#allocation7], 4
      %s127 = int_to_ptr.vmem [resolvable:$true] %s126
      %132 = dma.vmem_to_hbm [thread:$0]  %s127, 256, %s3, [#allocation4], 128, 128, 8
    $region25: #{tpu_custom_call.1} parent=1 // pred_fallthru
      _
    // Predicated region
    $region26: #{tpu_custom_call.1} parent=1 // pred_check
      _
    $region27: #{tpu_custom_call.1} parent=1 // pred_check_branch
      %134 = sbr.rel (0) target = $region29
    $region28: #{tpu_custom_call.1} parent=1 // pred_region
      %135 = dma.done [#allocation4], 256
    $region29: #{tpu_custom_call.1} parent=1 // pred_fallthru
      _
    %136 = vsyncpa [#allocation3], 1
    %137 = vsyncpa [#allocation6], 1
    %138 = vsyncpa [#allocation4], 1

</llo_original>
